<compile_context>
chip_gen: v6e
topology: v6e:2x2x1
jax: 0.10.0
libtpu: 0.0.40
codegen_flags: <defaults>
</compile_context>

<pallas_src>
import functools

import jax
import jax.numpy as jnp
from jax.experimental import pallas as pl
from jax.experimental.pallas import tpu as pltpu


def _round_up(x, m):
    return ((x + m - 1) // m) * m


def _cdiv(a, b):
    return -(-a // b)


def critic_kernel(s_ref, c_ref, d_ref,
                  w1s_ref, w1c_ref, w1d_ref, l1_ref,
                  w2_ref, l2_ref,
                  q_ref,
                  *, n1_true, n2_true):
    """One batch tile of the critic forward.

    s/c/d refs : (TILE_B, dim)        activation streams (f32 or bf16)
    w1* refs   : (dim, FC1P)          fc1 weight split along K (VMEM-resident)
    l1 ref     : (3, FC1P) f32        rows = [b1, gamma1, beta1]
    w2 ref     : (FC1P, FC2P)         fc2 weight (VMEM-resident)
    l2 ref     : (5, FC2P) f32        rows = [b2, gamma2, beta2, wq, bq@col0]
    q ref      : (1, 1, TILE_B) f32   lane-dense output row
    """
    eps = jnp.float32(1e-5)

    # ---- fc1: fused "concat" = three MXU matmuls into one f32 accumulator ---
    h1 = jnp.dot(s_ref[...], w1s_ref[...], preferred_element_type=jnp.float32)
    h1 = h1 + jnp.dot(c_ref[...], w1c_ref[...], preferred_element_type=jnp.float32)
    h1 = h1 + jnp.dot(d_ref[...], w1d_ref[...], preferred_element_type=jnp.float32)
    h1 = h1 + l1_ref[0:1, :]                                   # + b1

    # ---- LayerNorm(fc1) + ReLU: two-pass stats over the TRUE fc1 columns ----
    fc1p = h1.shape[-1]
    mask1 = jax.lax.broadcasted_iota(jnp.int32, (1, fc1p), 1) < n1_true
    mu1 = jnp.sum(h1, axis=-1, keepdims=True) / jnp.float32(n1_true)
    d1 = jnp.where(mask1, h1 - mu1, 0.0)
    var1 = jnp.sum(d1 * d1, axis=-1, keepdims=True) / jnp.float32(n1_true)
    h1 = d1 * jax.lax.rsqrt(var1 + eps) * l1_ref[1:2, :] + l1_ref[2:3, :]
    h1 = jnp.maximum(h1, 0.0)          # padded cols stay exactly 0 (g=be=0)

    # ---- fc2 + LayerNorm(fc2) + ReLU -----------------------------------------
    h2 = jnp.dot(h1.astype(w2_ref.dtype), w2_ref[...],
                 preferred_element_type=jnp.float32)
    h2 = h2 + l2_ref[0:1, :]                                   # + b2
    fc2p = h2.shape[-1]
    mask2 = jax.lax.broadcasted_iota(jnp.int32, (1, fc2p), 1) < n2_true
    mu2 = jnp.sum(h2, axis=-1, keepdims=True) / jnp.float32(n2_true)
    d2 = jnp.where(mask2, h2 - mu2, 0.0)
    var2 = jnp.sum(d2 * d2, axis=-1, keepdims=True) / jnp.float32(n2_true)
    h2 = d2 * jax.lax.rsqrt(var2 + eps) * l2_ref[1:2, :] + l2_ref[2:3, :]
    h2 = jnp.maximum(h2, 0.0)

    # ---- q head: (1, FC2P) . (TILE_B, FC2P)^T -> lane-dense (1, TILE_B) ------
    wq = l2_ref[3:4, :]
    bq = l2_ref[4:5, 0:1]
    q = jax.lax.dot_general(wq, h2, (((1,), (1,)), ((), ())),
                            preferred_element_type=jnp.float32) + bq
    q_ref[0] = q.astype(q_ref.dtype)


def prepare_params(params, input_dims, n_actions_cont, n_actions_disc, *,
                   weight_dtype=jnp.bfloat16, feature_pad=128):
    """One-time conversion of PyTorch-layout params to kernel layout.

    - Linear weights [out, in] -> [in, out], feature dims zero-padded to a
      multiple of `feature_pad` (dense MXU N path); fc1 weight split along K
      into (state, cont, disc) slices so the concat fuses into the kernel.
    - LN/head vectors packed into two small f32 arrays.
    Call once and reuse across steps.
    """
    fc1 = params["w1"].shape[0]
    fc2 = params["w2"].shape[0]
    fc1p = _round_up(fc1, feature_pad)
    fc2p = _round_up(fc2, feature_pad)

    def pad_last(a, width):
        return jnp.pad(a, [(0, 0)] * (a.ndim - 1) + [(0, width - a.shape[-1])])

    # fc1 weight: [out, in] -> [in, fc1p], split along K.
    w1t = pad_last(params["w1"].T.astype(jnp.float32), fc1p)
    s0, s1 = input_dims, input_dims + n_actions_cont
    w1s = w1t[:s0].astype(weight_dtype)
    w1c = w1t[s0:s1].astype(weight_dtype)
    w1d = w1t[s1:].astype(weight_dtype)

    # fc2 weight: pad K (padded h1 columns are exactly zero) and N.
    w2t = jnp.pad(params["w2"].T.astype(jnp.float32),
                  ((0, fc1p - fc1), (0, fc2p - fc2))).astype(weight_dtype)

    # Packed LN / head params (f32; zero padding keeps padded lanes at zero).
    l1 = jnp.stack([pad_last(params["b1"], fc1p),
                    pad_last(params["g1"], fc1p),
                    pad_last(params["be1"], fc1p)]).astype(jnp.float32)
    bq_row = jnp.zeros((fc2p,), jnp.float32).at[0].set(params["bq"][0])
    l2 = jnp.stack([pad_last(params["b2"], fc2p),
                    pad_last(params["g2"], fc2p),
                    pad_last(params["be2"], fc2p),
                    pad_last(params["wq"].reshape(fc2), fc2p),
                    bq_row]).astype(jnp.float32)

    return {"w1s": w1s, "w1c": w1c, "w1d": w1d, "w2": w2t,
            "l1": l1, "l2": l2, "n1": int(fc1), "n2": int(fc2)}


def critic_forward(state, cont_action, disc_action, prep, *,
                   tile_b=2048, vmem_tile_budget_bytes=36 << 20):
    """Batch-tiled Pallas forward. `prep` comes from prepare_params()."""
    B = state.shape[0]
    s_dim = prep["w1s"].shape[0]
    c_dim = prep["w1c"].shape[0]
    d_dim = prep["w1d"].shape[0]
    fc1p = prep["w1s"].shape[1]
    fc2p = prep["w2"].shape[1]
    assert state.shape[1] == s_dim
    assert cont_action.shape[1] == c_dim
    assert disc_action.shape[1] == d_dim

    # Stream activations in the matmul dtype (bf16 halves the per-step HBM
    # stream; ideally the upstream producer already emits this dtype so the
    # cast fuses away instead of adding an HBM round-trip).
    act_dtype = prep["w1s"].dtype
    state = state.astype(act_dtype)
    cont_action = cont_action.astype(act_dtype)
    disc_action = disc_action.astype(act_dtype)

    in_total = s_dim + c_dim + d_dim
    act_bytes = jnp.dtype(act_dtype).itemsize

    # ---- VMEM-budget-aware tile sizing (conservative for v7x's 64 MiB) ------
    resident_bytes = 2 * sum(int(prep[k].size) * prep[k].dtype.itemsize
                             for k in ("w1s", "w1c", "w1d", "w2", "l1", "l2"))
    per_row_bytes = (2 * act_bytes * in_total        # double-buffered inputs
                     + 2 * 4 * (fc1p + fc2p)         # h1/h2 f32 intermediates
                     + 2 * 4)                        # double-buffered output
    tb_cap = max(8, ((vmem_tile_budget_bytes - resident_bytes)
                     // per_row_bytes) // 8 * 8)
    tb_cap = min(tb_cap, tile_b)

    if B > tb_cap:
        tb = tb_cap
    else:
        # Whole batch fits a single tile; for mid-size B still use >=2 tiles so
        # the "parallel" grid axis shards across v7x's two TensorCores.
        n_target = 2 if B >= 16 else 1
        tb = _round_up(_cdiv(B, n_target), 8)
    num_tiles = _cdiv(B, tb)     # no jnp.pad: the edge block is partial
    grid = (num_tiles,)

    def batch_spec(dim):
        return pl.BlockSpec((tb, dim), lambda i: (i, 0))

    def resident(shape):
        # Same block every grid step -> stays VMEM-resident.
        return pl.BlockSpec(shape, lambda i: (0, 0))

    in_specs = [
        batch_spec(s_dim), batch_spec(c_dim), batch_spec(d_dim),
        resident((s_dim, fc1p)), resident((c_dim, fc1p)), resident((d_dim, fc1p)),
        resident((3, fc1p)),
        resident((fc1p, fc2p)),
        resident((5, fc2p)),
    ]
    out_spec = pl.BlockSpec((1, 1, tb), lambda i: (i, 0, 0))

    rows = num_tiles * tb
    cost = pl.CostEstimate(
        flops=2 * rows * (in_total * fc1p + fc1p * fc2p + fc2p)
              + 10 * rows * (fc1p + fc2p),
        transcendentals=2 * rows,                   # one rsqrt per row per LN
        bytes_accessed=rows * in_total * act_bytes + rows * 4
                       + resident_bytes // 2,
    )

    vmem_est = (resident_bytes
                + 2 * tb * in_total * act_bytes
                + 2 * tb * (fc1p + fc2p) * 4
                + 2 * tb * 4)
    vmem_limit = int(min(max(2 * vmem_est, 32 << 20), 48 << 20))

    kernel = functools.partial(critic_kernel,
                               n1_true=prep["n1"], n2_true=prep["n2"])

    out = pl.pallas_call(
        kernel,
        out_shape=jax.ShapeDtypeStruct((num_tiles, 1, tb), jnp.float32),
        grid_spec=pltpu.PrefetchScalarGridSpec(
            num_scalar_prefetch=0,
            grid=grid,
            in_specs=in_specs,
            out_specs=out_spec,
        ),
        compiler_params=pltpu.CompilerParams(
            dimension_semantics=("parallel",),
            vmem_limit_bytes=vmem_limit,
        ),
        cost_estimate=cost,
    )(state, cont_action, disc_action,
      prep["w1s"], prep["w1c"], prep["w1d"], prep["l1"],
      prep["w2"], prep["l2"])

    # Lane-dense (num_tiles, 1, tb) -> [B, 1]; rows beyond B are garbage from
    # the partial edge block and are dropped here.
    return out.reshape(-1)[:B].reshape(B, 1)


def init_params(key, input_dims, n_actions_cont, n_actions_disc, fc1_dims, fc2_dims):
    """Deterministic parameter init (PyTorch-Linear-style uniform bounds)."""
    in1 = input_dims + n_actions_cont + n_actions_disc
    ks = jax.random.split(key, 6)

    def lin(kw, kb, fan_in, fan_out):
        bound = 1.0 / jnp.sqrt(jnp.float32(fan_in))
        w = jax.random.uniform(kw, (fan_out, fan_in), jnp.float32, -bound, bound)
        b = jax.random.uniform(kb, (fan_out,), jnp.float32, -bound, bound)
        return w, b

    w1, b1 = lin(ks[0], ks[1], in1, fc1_dims)
    w2, b2 = lin(ks[2], ks[3], fc1_dims, fc2_dims)
    wq, bq = lin(ks[4], ks[5], fc2_dims, 1)
    return {
        "w1": w1, "b1": b1,
        "g1": jnp.ones((fc1_dims,), jnp.float32), "be1": jnp.zeros((fc1_dims,), jnp.float32),
        "w2": w2, "b2": b2,
        "g2": jnp.ones((fc2_dims,), jnp.float32), "be2": jnp.zeros((fc2_dims,), jnp.float32),
        "wq": wq, "bq": bq,
    }


def critic_reference(state, cont_action, disc_action, params):
    """Pure-JAX reference matching the PyTorch forward."""
    eps = 1e-5
    x = jnp.concatenate([state, cont_action, disc_action], axis=1)
    h1 = x @ params["w1"].T + params["b1"]
    mu = h1.mean(-1, keepdims=True)
    var = ((h1 - mu) ** 2).mean(-1, keepdims=True)
    h1 = jnp.maximum((h1 - mu) / jnp.sqrt(var + eps) * params["g1"] + params["be1"], 0.0)
    h2 = h1 @ params["w2"].T + params["b2"]
    mu = h2.mean(-1, keepdims=True)
    var = ((h2 - mu) ** 2).mean(-1, keepdims=True)
    h2 = jnp.maximum((h2 - mu) / jnp.sqrt(var + eps) * params["g2"] + params["be2"], 0.0)
    return h2 @ params["wq"].T + params["bq"]


if __name__ == "__main__":
    input_dims = 16
    n_actions_cont = 4
    n_actions_disc = 4
    fc1_dims = 32
    fc2_dims = 32

    key = jax.random.PRNGKey(0)
    k_p = jax.random.fold_in(key, 1234)

    params = init_params(k_p, input_dims, n_actions_cont, n_actions_disc,
                         fc1_dims, fc2_dims)
    # One-time layout prep: f32 weights (bit-matches the PyTorch reference) and
    # bf16 weights/activation-stream (halved HBM stream, small precision delta).
    prep_f32 = prepare_params(params, input_dims, n_actions_cont,
                              n_actions_disc, weight_dtype=jnp.float32)
    prep_bf16 = prepare_params(params, input_dims, n_actions_cont,
                               n_actions_disc, weight_dtype=jnp.bfloat16)

    for B, prep, atol in ((2, prep_f32, 1e-4),      # single partial tile
                          (20, prep_f32, 1e-4),     # two tiles (v7x megacore)
                          (20, prep_bf16, 1e-1)):   # bf16 activation stream
        ks, kc, kd = jax.random.split(jax.random.fold_in(key, B), 3)
        state = jax.random.normal(ks, (B, input_dims), jnp.float32)
        cont = jax.random.normal(kc, (B, n_actions_cont), jnp.float32)
        disc = jax.random.normal(kd, (B, n_actions_disc), jnp.float32)

        q = critic_forward(state, cont, disc, prep)
        jax.block_until_ready(q)
        q_ref = critic_reference(state, cont, disc, params)
        assert q.shape == (B, 1) and q.dtype == jnp.float32
        assert jnp.allclose(q, q_ref, atol=atol, rtol=atol), (B, q, q_ref)

    print("KERNEL_OK")
</pallas_src>

<mosaic_0001>
module attributes {stable_mosaic.version = 11 : i64} {
  func.func @critic_kernel(%arg0: i32, %arg1: memref<8x16xf32, #tpu.memory_space<vmem>>, %arg2: memref<8x4xf32, #tpu.memory_space<vmem>>, %arg3: memref<8x4xf32, #tpu.memory_space<vmem>>, %arg4: memref<16x128xf32, #tpu.memory_space<vmem>>, %arg5: memref<4x128xf32, #tpu.memory_space<vmem>>, %arg6: memref<4x128xf32, #tpu.memory_space<vmem>>, %arg7: memref<3x128xf32, #tpu.memory_space<vmem>>, %arg8: memref<128x128xf32, #tpu.memory_space<vmem>>, %arg9: memref<5x128xf32, #tpu.memory_space<vmem>>, %arg10: memref<1x1x8xf32, #tpu.memory_space<vmem>>) attributes {dimension_semantics = [#tpu.dimension_semantics<parallel>], iteration_bounds = array<i64: 1>, scalar_prefetch = 0 : i64, scratch_operands = 0 : i64, tpu.core_type = #tpu.core_type<tc>, window_params = [{transform_indices = @transform_0, window_bounds = array<i64: 8, 16>}, {transform_indices = @transform_1, window_bounds = array<i64: 8, 4>}, {transform_indices = @transform_2, window_bounds = array<i64: 8, 4>}, {pipeline_mode = #tpu.pipeline_mode<synchronous>, transform_indices = @transform_3, window_bounds = array<i64: 16, 128>}, {pipeline_mode = #tpu.pipeline_mode<synchronous>, transform_indices = @transform_4, window_bounds = array<i64: 4, 128>}, {pipeline_mode = #tpu.pipeline_mode<synchronous>, transform_indices = @transform_5, window_bounds = array<i64: 4, 128>}, {pipeline_mode = #tpu.pipeline_mode<synchronous>, transform_indices = @transform_6, window_bounds = array<i64: 3, 128>}, {pipeline_mode = #tpu.pipeline_mode<synchronous>, transform_indices = @transform_7, window_bounds = array<i64: 128, 128>}, {pipeline_mode = #tpu.pipeline_mode<synchronous>, transform_indices = @transform_8, window_bounds = array<i64: 5, 128>}, {transform_indices = @transform_9, window_bounds = array<i64: 1, 1, 8>}]} {
    %c0 = arith.constant 0 : index
    %c0_0 = arith.constant 0 : index
    %0 = vector.load %arg1[%c0, %c0_0] : memref<8x16xf32, #tpu.memory_space<vmem>>, vector<8x16xf32>
    %c0_1 = arith.constant 0 : index
    %c0_2 = arith.constant 0 : index
    %1 = vector.load %arg4[%c0_1, %c0_2] : memref<16x128xf32, #tpu.memory_space<vmem>>, vector<16x128xf32>
    %cst = arith.constant dense<0.000000e+00> : vector<8x128xf32>
    %2 = tpu.matmul %0, %1, %cst {dimension_numbers = #tpu.dot_dimension_numbers<[1], [0], [0], [1], [0, 0, 1, 1], [], []>} : vector<8x16xf32>, vector<16x128xf32>, vector<8x128xf32> -> vector<8x128xf32>
    %c0_3 = arith.constant 0 : index
    %c0_4 = arith.constant 0 : index
    %3 = vector.load %arg2[%c0_3, %c0_4] : memref<8x4xf32, #tpu.memory_space<vmem>>, vector<8x4xf32>
    %c0_5 = arith.constant 0 : index
    %c0_6 = arith.constant 0 : index
    %4 = vector.load %arg5[%c0_5, %c0_6] : memref<4x128xf32, #tpu.memory_space<vmem>>, vector<4x128xf32>
    %cst_7 = arith.constant dense<0.000000e+00> : vector<8x128xf32>
    %5 = tpu.matmul %3, %4, %cst_7 {dimension_numbers = #tpu.dot_dimension_numbers<[1], [0], [0], [1], [0, 0, 1, 1], [], []>} : vector<8x4xf32>, vector<4x128xf32>, vector<8x128xf32> -> vector<8x128xf32>
    %6 = arith.addf %2, %5 : vector<8x128xf32>
    %c0_8 = arith.constant 0 : index
    %c0_9 = arith.constant 0 : index
    %7 = vector.load %arg3[%c0_8, %c0_9] : memref<8x4xf32, #tpu.memory_space<vmem>>, vector<8x4xf32>
    %c0_10 = arith.constant 0 : index
    %c0_11 = arith.constant 0 : index
    %8 = vector.load %arg6[%c0_10, %c0_11] : memref<4x128xf32, #tpu.memory_space<vmem>>, vector<4x128xf32>
    %cst_12 = arith.constant dense<0.000000e+00> : vector<8x128xf32>
    %9 = tpu.matmul %7, %8, %cst_12 {dimension_numbers = #tpu.dot_dimension_numbers<[1], [0], [0], [1], [0, 0, 1, 1], [], []>} : vector<8x4xf32>, vector<4x128xf32>, vector<8x128xf32> -> vector<8x128xf32>
    %10 = arith.addf %6, %9 : vector<8x128xf32>
    %c0_13 = arith.constant 0 : index
    %c0_14 = arith.constant 0 : index
    %11 = vector.load %arg7[%c0_13, %c0_14] : memref<3x128xf32, #tpu.memory_space<vmem>>, vector<1x128xf32>
    %12 = vector.broadcast %11 : vector<1x128xf32> to vector<8x128xf32>
    %13 = arith.addf %10, %12 : vector<8x128xf32>
    %14 = tpu.iota {dimensions = array<i32: 1>} : vector<1x128xi32>
    %c32_i32 = arith.constant 32 : i32
    %15 = vector.broadcast %c32_i32 : i32 to vector<1x128xi32>
    %16 = arith.cmpi slt, %14, %15 : vector<1x128xi32>
    %cst_15 = arith.constant dense<0.000000e+00> : vector<8xf32>
    %17 = vector.multi_reduction <add>, %13, %cst_15 [1] : vector<8x128xf32> to vector<8xf32>
    %18 = vector.shape_cast %17 : vector<8xf32> to vector<8x1xf32>
    %cst_16 = arith.constant 3.200000e+01 : f32
    %19 = vector.broadcast %cst_16 : f32 to vector<8x1xf32>
    %20 = arith.divf %18, %19 : vector<8x1xf32>
    %21 = vector.broadcast %20 : vector<8x1xf32> to vector<8x128xf32>
    %22 = arith.subf %13, %21 : vector<8x128xf32>
    %cst_17 = arith.constant 0.000000e+00 : f32
    %23 = vector.shape_cast %16 : vector<1x128xi1> to vector<1x128xi1>
    %24 = vector.broadcast %23 : vector<1x128xi1> to vector<8x128xi1>
    %25 = vector.broadcast %cst_17 : f32 to vector<8x128xf32>
    %26 = arith.select %24, %22, %25 : vector<8x128xi1>, vector<8x128xf32>
    %27 = arith.mulf %26, %26 : vector<8x128xf32>
    %cst_18 = arith.constant dense<0.000000e+00> : vector<8xf32>
    %28 = vector.multi_reduction <add>, %27, %cst_18 [1] : vector<8x128xf32> to vector<8xf32>
    %29 = vector.shape_cast %28 : vector<8xf32> to vector<8x1xf32>
    %cst_19 = arith.constant 3.200000e+01 : f32
    %30 = vector.broadcast %cst_19 : f32 to vector<8x1xf32>
    %31 = arith.divf %29, %30 : vector<8x1xf32>
    %cst_20 = arith.constant 9.99999974E-6 : f32
    %32 = vector.broadcast %cst_20 : f32 to vector<8x1xf32>
    %33 = arith.addf %31, %32 : vector<8x1xf32>
    %34 = math.rsqrt %33 : vector<8x1xf32>
    %35 = vector.broadcast %34 : vector<8x1xf32> to vector<8x128xf32>
    %36 = arith.mulf %26, %35 : vector<8x128xf32>
    %c1 = arith.constant 1 : index
    %c0_21 = arith.constant 0 : index
    %37 = vector.load %arg7[%c1, %c0_21] : memref<3x128xf32, #tpu.memory_space<vmem>>, vector<1x128xf32>
    %38 = vector.broadcast %37 : vector<1x128xf32> to vector<8x128xf32>
    %39 = arith.mulf %36, %38 : vector<8x128xf32>
    %c2 = arith.constant 2 : index
    %c0_22 = arith.constant 0 : index
    %40 = vector.load %arg7[%c2, %c0_22] : memref<3x128xf32, #tpu.memory_space<vmem>>, vector<1x128xf32>
    %41 = vector.broadcast %40 : vector<1x128xf32> to vector<8x128xf32>
    %42 = arith.addf %39, %41 : vector<8x128xf32>
    %cst_23 = arith.constant 0.000000e+00 : f32
    %43 = vector.broadcast %cst_23 : f32 to vector<8x128xf32>
    %44 = arith.maximumf %42, %43 : vector<8x128xf32>
    %c0_24 = arith.constant 0 : index
    %c0_25 = arith.constant 0 : index
    %45 = vector.load %arg8[%c0_24, %c0_25] : memref<128x128xf32, #tpu.memory_space<vmem>>, vector<128x128xf32>
    %cst_26 = arith.constant dense<0.000000e+00> : vector<8x128xf32>
    %46 = tpu.matmul %44, %45, %cst_26 {dimension_numbers = #tpu.dot_dimension_numbers<[1], [0], [0], [1], [0, 0, 1, 1], [], []>} : vector<8x128xf32>, vector<128x128xf32>, vector<8x128xf32> -> vector<8x128xf32>
    %c0_27 = arith.constant 0 : index
    %c0_28 = arith.constant 0 : index
    %47 = vector.load %arg9[%c0_27, %c0_28] : memref<5x128xf32, #tpu.memory_space<vmem>>, vector<1x128xf32>
    %48 = vector.broadcast %47 : vector<1x128xf32> to vector<8x128xf32>
    %49 = arith.addf %46, %48 : vector<8x128xf32>
    %50 = tpu.iota {dimensions = array<i32: 1>} : vector<1x128xi32>
    %c32_i32_29 = arith.constant 32 : i32
    %51 = vector.broadcast %c32_i32_29 : i32 to vector<1x128xi32>
    %52 = arith.cmpi slt, %50, %51 : vector<1x128xi32>
    %cst_30 = arith.constant dense<0.000000e+00> : vector<8xf32>
    %53 = vector.multi_reduction <add>, %49, %cst_30 [1] : vector<8x128xf32> to vector<8xf32>
    %54 = vector.shape_cast %53 : vector<8xf32> to vector<8x1xf32>
    %cst_31 = arith.constant 3.200000e+01 : f32
    %55 = vector.broadcast %cst_31 : f32 to vector<8x1xf32>
    %56 = arith.divf %54, %55 : vector<8x1xf32>
    %57 = vector.broadcast %56 : vector<8x1xf32> to vector<8x128xf32>
    %58 = arith.subf %49, %57 : vector<8x128xf32>
    %cst_32 = arith.constant 0.000000e+00 : f32
    %59 = vector.shape_cast %52 : vector<1x128xi1> to vector<1x128xi1>
    %60 = vector.broadcast %59 : vector<1x128xi1> to vector<8x128xi1>
    %61 = vector.broadcast %cst_32 : f32 to vector<8x128xf32>
    %62 = arith.select %60, %58, %61 : vector<8x128xi1>, vector<8x128xf32>
    %63 = arith.mulf %62, %62 : vector<8x128xf32>
    %cst_33 = arith.constant dense<0.000000e+00> : vector<8xf32>
    %64 = vector.multi_reduction <add>, %63, %cst_33 [1] : vector<8x128xf32> to vector<8xf32>
    %65 = vector.shape_cast %64 : vector<8xf32> to vector<8x1xf32>
    %cst_34 = arith.constant 3.200000e+01 : f32
    %66 = vector.broadcast %cst_34 : f32 to vector<8x1xf32>
    %67 = arith.divf %65, %66 : vector<8x1xf32>
    %cst_35 = arith.constant 9.99999974E-6 : f32
    %68 = vector.broadcast %cst_35 : f32 to vector<8x1xf32>
    %69 = arith.addf %67, %68 : vector<8x1xf32>
    %70 = math.rsqrt %69 : vector<8x1xf32>
    %71 = vector.broadcast %70 : vector<8x1xf32> to vector<8x128xf32>
    %72 = arith.mulf %62, %71 : vector<8x128xf32>
    %c1_36 = arith.constant 1 : index
    %c0_37 = arith.constant 0 : index
    %73 = vector.load %arg9[%c1_36, %c0_37] : memref<5x128xf32, #tpu.memory_space<vmem>>, vector<1x128xf32>
    %74 = vector.broadcast %73 : vector<1x128xf32> to vector<8x128xf32>
    %75 = arith.mulf %72, %74 : vector<8x128xf32>
    %c2_38 = arith.constant 2 : index
    %c0_39 = arith.constant 0 : index
    %76 = vector.load %arg9[%c2_38, %c0_39] : memref<5x128xf32, #tpu.memory_space<vmem>>, vector<1x128xf32>
    %77 = vector.broadcast %76 : vector<1x128xf32> to vector<8x128xf32>
    %78 = arith.addf %75, %77 : vector<8x128xf32>
    %cst_40 = arith.constant 0.000000e+00 : f32
    %79 = vector.broadcast %cst_40 : f32 to vector<8x128xf32>
    %80 = arith.maximumf %78, %79 : vector<8x128xf32>
    %c3 = arith.constant 3 : index
    %c0_41 = arith.constant 0 : index
    %81 = vector.load %arg9[%c3, %c0_41] : memref<5x128xf32, #tpu.memory_space<vmem>>, vector<1x128xf32>
    %c4 = arith.constant 4 : index
    %c0_42 = arith.constant 0 : index
    %82 = vector.load %arg9[%c4, %c0_42] : memref<5x128xf32, #tpu.memory_space<vmem>>, vector<1x1xf32>
    %cst_43 = arith.constant dense<0.000000e+00> : vector<1x8xf32>
    %83 = tpu.matmul %81, %80, %cst_43 {dimension_numbers = #tpu.dot_dimension_numbers<[1], [1], [0], [0], [0, 0, 1, 0], [], []>} : vector<1x128xf32>, vector<8x128xf32>, vector<1x8xf32> -> vector<1x8xf32>
    %84 = vector.broadcast %82 : vector<1x1xf32> to vector<1x8xf32>
    %85 = arith.addf %83, %84 : vector<1x8xf32>
    %c0_44 = arith.constant 0 : index
    %c0_45 = arith.constant 0 : index
    %c0_46 = arith.constant 0 : index
    %86 = vector.load %arg10[%c0_44, %c0_45, %c0_46] : memref<1x1x8xf32, #tpu.memory_space<vmem>>, vector<1x1x8xf32>
    %87 = vector.shape_cast %86 : vector<1x1x8xf32> to vector<1x8xf32>
    %88 = vector.shape_cast %85 : vector<1x8xf32> to vector<1x1x8xf32>
    tpu.vector_store %arg10[%c0_44, %c0_45, %c0_46], %88 {strides = array<i32>} : memref<1x1x8xf32, #tpu.memory_space<vmem>>, vector<1x1x8xf32>,
    return
  }
  func.func @transform_0(%arg0: i32) -> (i32, i32) {
    %c0_i32 = arith.constant 0 : i32
    %c0_i32_0 = arith.constant 0 : i32
    return %arg0, %c0_i32 : i32, i32
  }
  func.func @transform_1(%arg0: i32) -> (i32, i32) {
    %c0_i32 = arith.constant 0 : i32
    %c0_i32_0 = arith.constant 0 : i32
    return %arg0, %c0_i32 : i32, i32
  }
  func.func @transform_2(%arg0: i32) -> (i32, i32) {
    %c0_i32 = arith.constant 0 : i32
    %c0_i32_0 = arith.constant 0 : i32
    return %arg0, %c0_i32 : i32, i32
  }
  func.func @transform_3(%arg0: i32) -> (i32, i32) {
    %c0_i32 = arith.constant 0 : i32
    %c0_i32_0 = arith.constant 0 : i32
    %c0_i32_1 = arith.constant 0 : i32
    return %c0_i32, %c0_i32_0 : i32, i32
  }
  func.func @transform_4(%arg0: i32) -> (i32, i32) {
    %c0_i32 = arith.constant 0 : i32
    %c0_i32_0 = arith.constant 0 : i32
    %c0_i32_1 = arith.constant 0 : i32
    return %c0_i32, %c0_i32_0 : i32, i32
  }
  func.func @transform_5(%arg0: i32) -> (i32, i32) {
    %c0_i32 = arith.constant 0 : i32
    %c0_i32_0 = arith.constant 0 : i32
    %c0_i32_1 = arith.constant 0 : i32
    return %c0_i32, %c0_i32_0 : i32, i32
  }
  func.func @transform_6(%arg0: i32) -> (i32, i32) {
    %c0_i32 = arith.constant 0 : i32
    %c0_i32_0 = arith.constant 0 : i32
    %c0_i32_1 = arith.constant 0 : i32
    return %c0_i32, %c0_i32_0 : i32, i32
  }
  func.func @transform_7(%arg0: i32) -> (i32, i32) {
    %c0_i32 = arith.constant 0 : i32
    %c0_i32_0 = arith.constant 0 : i32
    %c0_i32_1 = arith.constant 0 : i32
    return %c0_i32, %c0_i32_0 : i32, i32
  }
  func.func @transform_8(%arg0: i32) -> (i32, i32) {
    %c0_i32 = arith.constant 0 : i32
    %c0_i32_0 = arith.constant 0 : i32
    %c0_i32_1 = arith.constant 0 : i32
    return %c0_i32, %c0_i32_0 : i32, i32
  }
  func.func @transform_9(%arg0: i32) -> (i32, i32, i32) {
    %c0_i32 = arith.constant 0 : i32
    %c0_i32_0 = arith.constant 0 : i32
    %c0_i32_1 = arith.constant 0 : i32
    return %arg0, %c0_i32, %c0_i32_0 : i32, i32, i32
  }
}

</mosaic_0001>

<llo_original>
// kernel: tpu_custom_call.1
$region0: #{tpu_custom_call.1}
  #allocation0 [shape = 'u32[]', space=smem, size = 0x4, offset = 0x4, fixed_abs, tag = 'smem constant byte address 0x4 - core index']
  #allocation1 [shape = 'u32[144,128]{1,0:T(1,128)}', space=vmem, size = 0x12000, scoped, tag = 'internal scratch']
  %s0 = inlined_call_operand.hbm [shape: f32[2,16], index: 0, kind: input, shape index: {}]
  %s1 = inlined_call_operand.hbm [shape: f32[2,4], index: 1, kind: input, shape index: {}]
  %s2 = inlined_call_operand.vmem [shape: f32[2,4], index: 2, kind: input, shape index: {}]
  %s3 = inlined_call_operand.hbm [shape: f32[16,128], index: 3, kind: input, shape index: {}]
  %s4 = inlined_call_operand.vmem [shape: f32[4,128], index: 4, kind: input, shape index: {}]
  %s5 = inlined_call_operand.hbm [shape: f32[4,128], index: 5, kind: input, shape index: {}]
  %s6 = inlined_call_operand.hbm [shape: f32[3,128], index: 6, kind: input, shape index: {}]
  %s7 = inlined_call_operand.hbm [shape: f32[128,128], index: 7, kind: input, shape index: {}]
  %s8 = inlined_call_operand.vmem [shape: f32[5,128], index: 8, kind: input, shape index: {}]
  %s9 = inlined_call_operand.hbm [shape: f32[1,1,8], index: 9, kind: output, shape index: {}]
  %s10 = sld [smem:[#allocation0]]
  $region70: #{tpu_custom_call.1} parent=0
    _
  %s12 = ssub.s32 1, %s10
  %s13 = scalar_select 0, %s12, %s10
  $region1: #{tpu_custom_call.1} parent=0
    #allocation2 [shape = 'u8[4096]{0}', space=vmem, size = 0x1000, scoped, tag = 'input window, operand 0, single buffered']
    #allocation3 [shape = 's32[1]{0}', space=sflag, size = 0x4, scoped, tag = 'scoped memory for tpu_custom_call.1']
    #allocation4 [shape = 's32[1]{0}', space=sflag, size = 0x4, scoped, tag = 'scoped memory for tpu_custom_call.1']
    #allocation5 [shape = 'u8[4096]{0}', space=vmem, size = 0x1000, scoped, tag = 'input window, operand 1, single buffered']
    #allocation6 [shape = 's32[1]{0}', space=sflag, size = 0x4, scoped, tag = 'scoped memory for tpu_custom_call.1']
    #allocation7 [shape = 'u8[8192]{0}', space=vmem, size = 0x2000, scoped, tag = 'input window, operand 3, single buffered']
    #allocation8 [shape = 'u8[2048]{0}', space=vmem, size = 0x800, scoped, tag = 'input window, operand 5, single buffered']
    #allocation9 [shape = 's32[1]{0}', space=sflag, size = 0x4, scoped, tag = 'scoped memory for tpu_custom_call.1']
    #allocation10 [shape = 'u8[2048]{0}', space=vmem, size = 0x800, scoped, tag = 'input window, operand 6, single buffered']
    #allocation11 [shape = 'u8[65536]{0}', space=vmem, size = 0x10000, scoped, tag = 'input window, operand 7, single buffered']
    #allocation12 [shape = 's32[1]{0}', space=sflag, size = 0x4, scoped, tag = 'scoped memory for tpu_custom_call.1']
    #allocation13 [shape = 'u8[512]{0}', space=vmem, size = 0x400, scoped, tag = 'output window, operand 0, single buffered']
    %14 = vsyncpa [#allocation3], 0
    %15 = vsyncpa [#allocation6], 0
    %16 = vsyncpa [#allocation9], 0
    %17 = vsyncpa [#allocation12], 0
    %18 = vsyncpa [#allocation4], 0
    // Predicated region
    $region2: #{tpu_custom_call.1} parent=1 // pred_check
      _
    $region3: #{tpu_custom_call.1} parent=1 // pred_check_branch
      %20 = sbr.rel (0) target = $region5
    $region4: #{tpu_custom_call.1} parent=1 // pred_region
      %s22 = ssub.s32 128, 32
      %23 = vsyncadd [#allocation3], %s22
      %s24 = sshll.u32 [#allocation2], 4
      %s25 = int_to_ptr.vmem [resolvable:$true] %s24
      %30 = dma.hbm_to_vmem [thread:$0]  %s0, 32, %s25, [#allocation3], 32, 32, 2
    $region5: #{tpu_custom_call.1} parent=1 // pred_fallthru
      _
    // Predicated region
    $region6: #{tpu_custom_call.1} parent=1 // pred_check
      _
    $region7: #{tpu_custom_call.1} parent=1 // pred_check_branch
      %32 = sbr.rel (0) target = $region9
    $region8: #{tpu_custom_call.1} parent=1 // pred_region
      %s34 = ssub.s32 128, 32
      %35 = vsyncadd [#allocation6], %s34
      %s36 = sshll.u32 [#allocation5], 4
      %s37 = int_to_ptr.vmem [resolvable:$true] %s36
      %42 = dma.hbm_to_vmem [thread:$0]  %s1, 32, %s37, [#allocation6], 32, 32, 2
    $region9: #{tpu_custom_call.1} parent=1 // pred_fallthru
      _
    // Predicated region
    $region10: #{tpu_custom_call.1} parent=1 // pred_check
      _
    $region11: #{tpu_custom_call.1} parent=1 // pred_check_branch
      %44 = sbr.rel (0) target = $region13
    $region12: #{tpu_custom_call.1} parent=1 // pred_region
      _
    $region13: #{tpu_custom_call.1} parent=1 // pred_fallthru
      _
    // Predicated region
    $region14: #{tpu_custom_call.1} parent=1 // pred_check
      _
    $region15: #{tpu_custom_call.1} parent=1 // pred_check_branch
      %46 = sbr.rel (0) target = $region17
    $region16: #{tpu_custom_call.1} parent=1 // pred_region
      %s48 = ssub.s32 256, 256
      %49 = vsyncadd [#allocation6], %s48
      %s50 = sshll.u32 [#allocation7], 4
      %s51 = int_to_ptr.vmem [resolvable:$true] %s50
      %56 = dma.hbm_to_vmem [thread:$0]  %s3, 256, %s51, [#allocation6], 128, 128, 8
    $region17: #{tpu_custom_call.1} parent=1 // pred_fallthru
      _
    // Predicated region
    $region18: #{tpu_custom_call.1} parent=1 // pred_check
      _
    $region19: #{tpu_custom_call.1} parent=1 // pred_check_branch
      %58 = sbr.rel (0) target = $region21
    $region20: #{tpu_custom_call.1} parent=1 // pred_region
      _
    $region21: #{tpu_custom_call.1} parent=1 // pred_fallthru
      _
    // Predicated region
    $region22: #{tpu_custom_call.1} parent=1 // pred_check
      _
    $region23: #{tpu_custom_call.1} parent=1 // pred_check_branch
      %60 = sbr.rel (0) target = $region25
    $region24: #{tpu_custom_call.1} parent=1 // pred_region
      %s62 = ssub.s32 64, 64
      %63 = vsyncadd [#allocation9], %s62
      %s65 = sshll.u32 [#allocation8], 4
      %s66 = int_to_ptr.vmem [resolvable:$true] %s65
      %68 = dma.hbm_to_vmem [thread:$0]  %s5, 64, %s66, [#allocation9]
    $region25: #{tpu_custom_call.1} parent=1 // pred_fallthru
      _
    // Predicated region
    $region26: #{tpu_custom_call.1} parent=1 // pred_check
      _
    $region27: #{tpu_custom_call.1} parent=1 // pred_check_branch
      %70 = sbr.rel (0) target = $region29
    $region28: #{tpu_custom_call.1} parent=1 // pred_region
      %s72 = ssub.s32 64, 64
      %73 = vsyncadd [#allocation9], %s72
      %s75 = sshll.u32 [#allocation10], 4
      %s76 = int_to_ptr.vmem [resolvable:$true] %s75
      %78 = dma.hbm_to_vmem [thread:$0]  %s6, 64, %s76, [#allocation9]
    $region29: #{tpu_custom_call.1} parent=1 // pred_fallthru
      _
    // Predicated region
    $region30: #{tpu_custom_call.1} parent=1 // pred_check
      _
    $region31: #{tpu_custom_call.1} parent=1 // pred_check_branch
      %80 = sbr.rel (0) target = $region33
    $region32: #{tpu_custom_call.1} parent=1 // pred_region
      %s82 = ssub.s32 2048, 2048
      %83 = vsyncadd [#allocation12], %s82
      %s84 = sshll.u32 [#allocation11], 4
      %s85 = int_to_ptr.vmem [resolvable:$true] %s84
      %90 = dma.hbm_to_vmem [thread:$0]  %s7, 2048, %s85, [#allocation12], 128, 128, 8
    $region33: #{tpu_custom_call.1} parent=1 // pred_fallthru
      _
    // Predicated region
    $region34: #{tpu_custom_call.1} parent=1 // pred_check
      _
    $region35: #{tpu_custom_call.1} parent=1 // pred_check_branch
      %92 = sbr.rel (0) target = $region37
    $region36: #{tpu_custom_call.1} parent=1 // pred_region
      _
    $region37: #{tpu_custom_call.1} parent=1 // pred_fallthru
      _
    // Predicated region
    $region38: #{tpu_custom_call.1} parent=1 // pred_check
      _
    $region39: #{tpu_custom_call.1} parent=1 // pred_check_branch
      %94 = sbr.rel (0) target = $region41
    $region40: #{tpu_custom_call.1} parent=1 // pred_region
      %95 = dma.done [#allocation3], 128
    $region41: #{tpu_custom_call.1} parent=1 // pred_fallthru
      _
    // Predicated region
    $region42: #{tpu_custom_call.1} parent=1 // pred_check
      _
    $region43: #{tpu_custom_call.1} parent=1 // pred_check_branch
      %97 = sbr.rel (0) target = $region45
    $region44: #{tpu_custom_call.1} parent=1 // pred_region
      %98 = dma.done [#allocation6], 128
    $region45: #{tpu_custom_call.1} parent=1 // pred_fallthru
      _
    // Predicated region
    $region46: #{tpu_custom_call.1} parent=1 // pred_check
      _
    $region47: #{tpu_custom_call.1} parent=1 // pred_check_branch
      %100 = sbr.rel (0) target = $region49
    $region48: #{tpu_custom_call.1} parent=1 // pred_region
      %101 = dma.done [#allocation6], 256
    $region49: #{tpu_custom_call.1} parent=1 // pred_fallthru
      _
    // Predicated region
    $region50: #{tpu_custom_call.1} parent=1 // pred_check
      _
    $region51: #{tpu_custom_call.1} parent=1 // pred_check_branch
      %103 = sbr.rel (0) target = $region53
    $region52: #{tpu_custom_call.1} parent=1 // pred_region
      %104 = dma.done [#allocation9], 64
    $region53: #{tpu_custom_call.1} parent=1 // pred_fallthru
      _
    // Predicated region
    $region54: #{tpu_custom_call.1} parent=1 // pred_check
      _
    $region55: #{tpu_custom_call.1} parent=1 // pred_check_branch
      %106 = sbr.rel (0) target = $region57
    $region56: #{tpu_custom_call.1} parent=1 // pred_region
      %107 = dma.done [#allocation9], 64
    $region57: #{tpu_custom_call.1} parent=1 // pred_fallthru
      _
    // Predicated region
    $region58: #{tpu_custom_call.1} parent=1 // pred_check
      _
    $region59: #{tpu_custom_call.1} parent=1 // pred_check_branch
      %109 = sbr.rel (0) target = $region61
    $region60: #{tpu_custom_call.1} parent=1 // pred_region
      %110 = dma.done [#allocation12], 2048
    $region61: #{tpu_custom_call.1} parent=1 // pred_fallthru
      _
    %v111 = vld [vmem:[#allocation2] sm:$0xff]
    %v112 = vld [vmem:[#allocation7] sm:$0xff]
    %v113 = vld [vmem:[#allocation7 + $0x8] sm:$0xff]
    %v114 = vld [vmem:[#allocation5] sm:$0xff]
    %v115 = vld [vmem:[%s4] sm:$0xf]
    %vm116 = vcmask 31744
    %v118 = vsel %vm116, %v114, 0
    %vm120 = vcmask 1043456
    %v122 = vsel %vm120, %v115, 0
    %124 = vmatprep.subr.mxu0 0.0
    %125 = vmatpush1.msra.mxu0 0.0
    %126 = vmatprep.subr.mxu0 0.0
    %127 = vmatpush1.msra.mxu0 0.0
    %128 = vmatprep.subr.mxu0 0.0
    %129 = vmatpush1.msra.mxu0 0.0
    %130 = vmatprep.subr.mxu0 0.0
    %131 = vmatpush1.msra.mxu0 0.0
    %132 = vmatprep.subr.mxu0 0.0
    %133 = vmatpush1.msra.mxu0 0.0
    %134 = vmatprep.subr.mxu0 0.0
    %135 = vmatpush1.msra.mxu0 0.0
    %136 = vmatprep.subr.mxu0 0.0
    %137 = vmatpush1.msra.mxu0 0.0
    %138 = vmatprep.subr.mxu0 0.0
    %139 = vmatpush1.msra.mxu0 0.0
    %140 = vmatprep.subr.mxu0 0.0
    %141 = vmatpush1.msra.mxu0 0.0
    %142 = vmatprep.subr.mxu0 0.0
    %143 = vmatpush1.msra.mxu0 0.0
    %144 = vmatprep.subr.mxu0 0.0
    %145 = vmatpush1.msra.mxu0 0.0
    %146 = vmatprep.subr.mxu0 0.0
    %147 = vmatpush1.msra.mxu0 0.0
    %148 = vmatprep.subr.mxu0 0.0
    %149 = vmatpush1.msra.mxu0 0.0
    %150 = vmatprep.subr.mxu0 0.0
    %151 = vmatpush1.msra.mxu0 0.0
    %152 = vmatprep.subr.mxu0 0.0
    %153 = vmatpush1.msra.mxu0 0.0
    %154 = vmatprep.subr.mxu0 0.0
    %155 = vmatpush1.msra.mxu0 %v122
    %156 = vmatprep.subr.mxu0 0.0
    %157 = vmatpush2.msra.mxu0 0.0
    %158 = vmatprep.subr.mxu0 0.0
    %159 = vmatpush2.msra.mxu0 0.0
    %160 = vmatprep.subr.mxu0 0.0
    %161 = vmatpush2.msra.mxu0 0.0
    %162 = vmatprep.subr.mxu0 0.0
    %163 = vmatpush2.msra.mxu0 0.0
    %164 = vmatprep.subr.mxu0 0.0
    %165 = vmatpush2.msra.mxu0 0.0
    %166 = vmatprep.subr.mxu0 0.0
    %167 = vmatpush2.msra.mxu0 0.0
    %168 = vmatprep.subr.mxu0 0.0
    %169 = vmatpush2.msra.mxu0 0.0
    %170 = vmatprep.subr.mxu0 0.0
    %171 = vmatpush2.msra.mxu0 0.0
    %172 = vmatprep.subr.mxu0 0.0
    %173 = vmatpush2.msra.mxu0 0.0
    %174 = vmatprep.subr.mxu0 0.0
    %175 = vmatpush2.msra.mxu0 0.0
    %176 = vmatprep.subr.mxu0 0.0
    %177 = vmatpush2.msra.mxu0 0.0
    %178 = vmatprep.subr.mxu0 0.0
    %179 = vmatpush2.msra.mxu0 0.0
    %180 = vmatprep.subr.mxu0 0.0
    %181 = vmatpush2.msra.mxu0 0.0
    %182 = vmatprep.subr.mxu0 0.0
    %183 = vmatpush2.msra.mxu0 0.0
    %184 = vmatprep.subr.mxu0 0.0
    %185 = vmatpush2.msra.mxu0 0.0
    %186 = vmatprep.subr.mxu0 0.0
    %187 = vmatpush2.msra.mxu0 0.0
    %188 = vmatprep.mubr.f32.mxu0 0.0
    %189 = vmatmul.mubr.f32.gmra.mxu0 %v118
    %v190 = vpop.f32.mrf.mxu0
    %v191 = vadd.f32 0.0, %v190
    %v192 = vpop.f32.mrf.mxu0
    %193 = vdwg.mxu0
    %vm194 = vcmask 130048
    %v196 = vsel %vm194, %v111, 0
    %198 = vmatprep.subr.mxu0 0.0
    %199 = vmatpush1.msra.mxu0 0.0
    %200 = vmatprep.subr.mxu0 0.0
    %201 = vmatpush1.msra.mxu0 0.0
    %202 = vmatprep.subr.mxu0 0.0
    %203 = vmatpush1.msra.mxu0 0.0
    %204 = vmatprep.subr.mxu0 0.0
    %205 = vmatpush1.msra.mxu0 0.0
    %206 = vmatprep.subr.mxu0 0.0
    %207 = vmatpush1.msra.mxu0 0.0
    %208 = vmatprep.subr.mxu0 0.0
    %209 = vmatpush1.msra.mxu0 0.0
    %210 = vmatprep.subr.mxu0 0.0
    %211 = vmatpush1.msra.mxu0 0.0
    %212 = vmatprep.subr.mxu0 0.0
    %213 = vmatpush1.msra.mxu0 0.0
    %214 = vmatprep.subr.mxu0 0.0
    %215 = vmatpush1.msra.mxu0 0.0
    %216 = vmatprep.subr.mxu0 0.0
    %217 = vmatpush1.msra.mxu0 0.0
    %218 = vmatprep.subr.mxu0 0.0
    %219 = vmatpush1.msra.mxu0 0.0
    %220 = vmatprep.subr.mxu0 0.0
    %221 = vmatpush1.msra.mxu0 0.0
    %222 = vmatprep.subr.mxu0 0.0
    %223 = vmatpush1.msra.mxu0 0.0
    %224 = vmatprep.subr.mxu0 0.0
    %225 = vmatpush1.msra.mxu0 0.0
    %226 = vmatprep.subr.mxu0 0.0
    %227 = vmatpush1.msra.mxu0 %v113
    %228 = vmatprep.subr.mxu0 0.0
    %229 = vmatpush1.msra.mxu0 %v112
    %230 = vmatprep.subr.mxu0 0.0
    %231 = vmatpush2.msra.mxu0 0.0
    %232 = vmatprep.subr.mxu0 0.0
    %233 = vmatpush2.msra.mxu0 0.0
    %234 = vmatprep.subr.mxu0 0.0
    %235 = vmatpush2.msra.mxu0 0.0
    %236 = vmatprep.subr.mxu0 0.0
    %237 = vmatpush2.msra.mxu0 0.0
    %238 = vmatprep.subr.mxu0 0.0
    %239 = vmatpush2.msra.mxu0 0.0
    %240 = vmatprep.subr.mxu0 0.0
    %241 = vmatpush2.msra.mxu0 0.0
    %242 = vmatprep.subr.mxu0 0.0
    %243 = vmatpush2.msra.mxu0 0.0
    %244 = vmatprep.subr.mxu0 0.0
    %245 = vmatpush2.msra.mxu0 0.0
    %246 = vmatprep.subr.mxu0 0.0
    %247 = vmatpush2.msra.mxu0 0.0
    %248 = vmatprep.subr.mxu0 0.0
    %249 = vmatpush2.msra.mxu0 0.0
    %250 = vmatprep.subr.mxu0 0.0
    %251 = vmatpush2.msra.mxu0 0.0
    %252 = vmatprep.subr.mxu0 0.0
    %253 = vmatpush2.msra.mxu0 0.0
    %254 = vmatprep.subr.mxu0 0.0
    %255 = vmatpush2.msra.mxu0 0.0
    %256 = vmatprep.subr.mxu0 0.0
    %257 = vmatpush2.msra.mxu0 0.0
    %258 = vmatprep.subr.mxu0 0.0
    %259 = vmatpush2.msra.mxu0 0.0
    %260 = vmatprep.subr.mxu0 0.0
    %261 = vmatpush2.msra.mxu0 0.0
    %262 = vmatprep.mubr.f32.mxu0 0.0
    %263 = vmatmul.mubr.f32.gmra.mxu0 %v196
    %v264 = vpop.f32.mrf.mxu0
    %v265 = vadd.f32 %v191, %v264
    %v266 = vpop.f32.mrf.mxu0
    %267 = vdwg.mxu0
    %v268 = vld [vmem:[%s2] sm:$0xff]
    %v269 = vld [vmem:[#allocation8] sm:$0xf]
    %v271 = vsel %vm116, %v268, 0
    %v274 = vsel %vm120, %v269, 0
    %276 = vmatprep.subr.mxu0 0.0
    %277 = vmatpush1.msra.mxu0 0.0
    %278 = vmatprep.subr.mxu0 0.0
    %279 = vmatpush1.msra.mxu0 0.0
    %280 = vmatprep.subr.mxu0 0.0
    %281 = vmatpush1.msra.mxu0 0.0
    %282 = vmatprep.subr.mxu0 0.0
    %283 = vmatpush1.msra.mxu0 0.0
    %284 = vmatprep.subr.mxu0 0.0
    %285 = vmatpush1.msra.mxu0 0.0
    %286 = vmatprep.subr.mxu0 0.0
    %287 = vmatpush1.msra.mxu0 0.0
    %288 = vmatprep.subr.mxu0 0.0
    %289 = vmatpush1.msra.mxu0 0.0
    %290 = vmatprep.subr.mxu0 0.0
    %291 = vmatpush1.msra.mxu0 0.0
    %292 = vmatprep.subr.mxu0 0.0
    %293 = vmatpush1.msra.mxu0 0.0
    %294 = vmatprep.subr.mxu0 0.0
    %295 = vmatpush1.msra.mxu0 0.0
    %296 = vmatprep.subr.mxu0 0.0
    %297 = vmatpush1.msra.mxu0 0.0
    %298 = vmatprep.subr.mxu0 0.0
    %299 = vmatpush1.msra.mxu0 0.0
    %300 = vmatprep.subr.mxu0 0.0
    %301 = vmatpush1.msra.mxu0 0.0
    %302 = vmatprep.subr.mxu0 0.0
    %303 = vmatpush1.msra.mxu0 0.0
    %304 = vmatprep.subr.mxu0 0.0
    %305 = vmatpush1.msra.mxu0 0.0
    %306 = vmatprep.subr.mxu0 0.0
    %307 = vmatpush1.msra.mxu0 %v274
    %308 = vmatprep.subr.mxu0 0.0
    %309 = vmatpush2.msra.mxu0 0.0
    %310 = vmatprep.subr.mxu0 0.0
    %311 = vmatpush2.msra.mxu0 0.0
    %312 = vmatprep.subr.mxu0 0.0
    %313 = vmatpush2.msra.mxu0 0.0
    %314 = vmatprep.subr.mxu0 0.0
    %315 = vmatpush2.msra.mxu0 0.0
    %316 = vmatprep.subr.mxu0 0.0
    %317 = vmatpush2.msra.mxu0 0.0
    %318 = vmatprep.subr.mxu0 0.0
    %319 = vmatpush2.msra.mxu0 0.0
    %320 = vmatprep.subr.mxu0 0.0
    %321 = vmatpush2.msra.mxu0 0.0
    %322 = vmatprep.subr.mxu0 0.0
    %323 = vmatpush2.msra.mxu0 0.0
    %324 = vmatprep.subr.mxu0 0.0
    %325 = vmatpush2.msra.mxu0 0.0
    %326 = vmatprep.subr.mxu0 0.0
    %327 = vmatpush2.msra.mxu0 0.0
    %328 = vmatprep.subr.mxu0 0.0
    %329 = vmatpush2.msra.mxu0 0.0
    %330 = vmatprep.subr.mxu0 0.0
    %331 = vmatpush2.msra.mxu0 0.0
    %332 = vmatprep.subr.mxu0 0.0
    %333 = vmatpush2.msra.mxu0 0.0
    %334 = vmatprep.subr.mxu0 0.0
    %335 = vmatpush2.msra.mxu0 0.0
    %336 = vmatprep.subr.mxu0 0.0
    %337 = vmatpush2.msra.mxu0 0.0
    %338 = vmatprep.subr.mxu0 0.0
    %339 = vmatpush2.msra.mxu0 0.0
    %340 = vmatprep.mubr.f32.mxu0 0.0
    %341 = vmatmul.mubr.f32.gmra.mxu0 %v271
    %v342 = vpop.f32.mrf.mxu0
    %v343 = vadd.f32 0.0, %v342
    %v344 = vpop.f32.mrf.mxu0
    %345 = vdwg.mxu0
    %v346 = vadd.f32 %v265, %v343
    %v347 = vld [vmem:[#allocation10] sm:$0x1]
    %v348 = vlaneseq
    %v349 = vshrl.u32 %v348, 7
    %v350 = vsub.s32 0, %v349
    %v351 = vrot.slane %v347, %v350
    %v352 = vadd.f32 %v346, %v351
    %v353 = vlaneseq
    %v354 = vand.u32 %v353, 127
    %vm355 = vcmp.lt.s32.totalorder %v354, 32
    %356 = vadd.xlane.f32.xlu0 %v352
    %v357 = vpop.xlane.xlu0 %356
    %v358 = vrcp.pop 32.0
    %v359 = vmul.f32 %v357, %v358
    %v360 = vsub.f32 %v352, %v359
    %v361 = vsel %vm355, 1, 0
    %vm362 = vcmp.eq.s32.totalorder %v361, 1
    %v363 = vsel %vm362, %v360, 0.0
    %v364 = vmul.f32 %v363, %v363
    %365 = vadd.xlane.f32.xlu0 %v364
    %v366 = vpop.xlane.xlu0 %365
    %v367 = vmul.f32 %v366, %v358
    %v368 = vadd.f32 %v367, 1e-05
    %v369 = vrsqrt.pop %v368
    %v370 = vmul.f32 %v363, %v369
    %v371 = vld [vmem:[#allocation10 + $0x1] sm:$0x1]
    %v372 = vlaneseq
    %v373 = vshrl.u32 %v372, 7
    %v374 = vsub.s32 0, %v373
    %v375 = vrot.slane %v371, %v374
    %v376 = vmul.f32 %v370, %v375
    %v377 = vld [vmem:[#allocation10 + $0x2] sm:$0x1]
    %v378 = vlaneseq
    %v379 = vshrl.u32 %v378, 7
    %v380 = vsub.s32 0, %v379
    %v381 = vrot.slane %v377, %v380
    %v382 = vadd.f32 %v376, %v381
    %v383 = vmax.f32 %v382, 0.0
    %v384 = vld [vmem:[#allocation11] sm:$0xff]
    %v385 = vld [vmem:[#allocation11 + $0x8] sm:$0xff]
    %v386 = vld [vmem:[#allocation11 + $0x10] sm:$0xff]
    %v387 = vld [vmem:[#allocation11 + $0x18] sm:$0xff]
    %v388 = vld [vmem:[#allocation11 + $0x20] sm:$0xff]
    %v389 = vld [vmem:[#allocation11 + $0x28] sm:$0xff]
    %v390 = vld [vmem:[#allocation11 + $0x30] sm:$0xff]
    %v391 = vld [vmem:[#allocation11 + $0x38] sm:$0xff]
    %v392 = vld [vmem:[#allocation11 + $0x40] sm:$0xff]
    %v393 = vld [vmem:[#allocation11 + $0x48] sm:$0xff]
    %v394 = vld [vmem:[#allocation11 + $0x50] sm:$0xff]
    %v395 = vld [vmem:[#allocation11 + $0x58] sm:$0xff]
    %v396 = vld [vmem:[#allocation11 + $0x60] sm:$0xff]
    %v397 = vld [vmem:[#allocation11 + $0x68] sm:$0xff]
    %v398 = vld [vmem:[#allocation11 + $0x70] sm:$0xff]
    %v399 = vld [vmem:[#allocation11 + $0x78] sm:$0xff]
    %v400 = vld [vmem:[%s8] sm:$0x1]
    %v401 = vlaneseq
    %v402 = vshrl.u32 %v401, 7
    %v403 = vsub.s32 0, %v402
    %v404 = vrot.slane %v400, %v403
    %405 = vmatprep.subr.mxu0 0.0
    %406 = vmatpush1.msra.mxu0 %v399
    %407 = vmatprep.subr.mxu0 0.0
    %408 = vmatpush1.msra.mxu0 %v398
    %409 = vmatprep.subr.mxu0 0.0
    %410 = vmatpush1.msra.mxu0 %v397
    %411 = vmatprep.subr.mxu0 0.0
    %412 = vmatpush1.msra.mxu0 %v396
    %413 = vmatprep.subr.mxu0 0.0
    %414 = vmatpush1.msra.mxu0 %v395
    %415 = vmatprep.subr.mxu0 0.0
    %416 = vmatpush1.msra.mxu0 %v394
    %417 = vmatprep.subr.mxu0 0.0
    %418 = vmatpush1.msra.mxu0 %v393
    %419 = vmatprep.subr.mxu0 0.0
    %420 = vmatpush1.msra.mxu0 %v392
    %421 = vmatprep.subr.mxu0 0.0
    %422 = vmatpush1.msra.mxu0 %v391
    %423 = vmatprep.subr.mxu0 0.0
    %424 = vmatpush1.msra.mxu0 %v390
    %425 = vmatprep.subr.mxu0 0.0
    %426 = vmatpush1.msra.mxu0 %v389
    %427 = vmatprep.subr.mxu0 0.0
    %428 = vmatpush1.msra.mxu0 %v388
    %429 = vmatprep.subr.mxu0 0.0
    %430 = vmatpush1.msra.mxu0 %v387
    %431 = vmatprep.subr.mxu0 0.0
    %432 = vmatpush1.msra.mxu0 %v386
    %433 = vmatprep.subr.mxu0 0.0
    %434 = vmatpush1.msra.mxu0 %v385
    %435 = vmatprep.subr.mxu0 0.0
    %436 = vmatpush1.msra.mxu0 %v384
    %437 = vmatprep.subr.mxu0 0.0
    %438 = vmatpush2.msra.mxu0 0.0
    %439 = vmatprep.subr.mxu0 0.0
    %440 = vmatpush2.msra.mxu0 0.0
    %441 = vmatprep.subr.mxu0 0.0
    %442 = vmatpush2.msra.mxu0 0.0
    %443 = vmatprep.subr.mxu0 0.0
    %444 = vmatpush2.msra.mxu0 0.0
    %445 = vmatprep.subr.mxu0 0.0
    %446 = vmatpush2.msra.mxu0 0.0
    %447 = vmatprep.subr.mxu0 0.0
    %448 = vmatpush2.msra.mxu0 0.0
    %449 = vmatprep.subr.mxu0 0.0
    %450 = vmatpush2.msra.mxu0 0.0
    %451 = vmatprep.subr.mxu0 0.0
    %452 = vmatpush2.msra.mxu0 0.0
    %453 = vmatprep.subr.mxu0 0.0
    %454 = vmatpush2.msra.mxu0 0.0
    %455 = vmatprep.subr.mxu0 0.0
    %456 = vmatpush2.msra.mxu0 0.0
    %457 = vmatprep.subr.mxu0 0.0
    %458 = vmatpush2.msra.mxu0 0.0
    %459 = vmatprep.subr.mxu0 0.0
    %460 = vmatpush2.msra.mxu0 0.0
    %461 = vmatprep.subr.mxu0 0.0
    %462 = vmatpush2.msra.mxu0 0.0
    %463 = vmatprep.subr.mxu0 0.0
    %464 = vmatpush2.msra.mxu0 0.0
    %465 = vmatprep.subr.mxu0 0.0
    %466 = vmatpush2.msra.mxu0 0.0
    %467 = vmatprep.subr.mxu0 0.0
    %468 = vmatpush2.msra.mxu0 0.0
    %469 = vmatprep.mubr.f32.mxu0 0.0
    %470 = vmatmul.mubr.f32.gmra.mxu0 %v383
    %v471 = vpop.f32.mrf.mxu0
    %v472 = vadd.f32 %v404, %v471
    %v473 = vpop.f32.mrf.mxu0
    %474 = vdwg.mxu0
    %475 = vadd.xlane.f32.xlu0 %v472
    %v476 = vpop.xlane.xlu0 %475
    %v477 = vmul.f32 %v476, %v358
    %v478 = vsub.f32 %v472, %v477
    %v479 = vsel %vm362, %v478, 0.0
    %v480 = vmul.f32 %v479, %v479
    %481 = vadd.xlane.f32.xlu0 %v480
    %v482 = vpop.xlane.xlu0 %481
    %v483 = vmul.f32 %v482, %v358
    %v484 = vadd.f32 %v483, 1e-05
    %v485 = vrsqrt.pop %v484
    %v486 = vmul.f32 %v479, %v485
    %v487 = vld [vmem:[%s8 + $0x1] sm:$0x1]
    %v488 = vlaneseq
    %v489 = vshrl.u32 %v488, 7
    %v490 = vsub.s32 0, %v489
    %v491 = vrot.slane %v487, %v490
    %v492 = vmul.f32 %v486, %v491
    %v493 = vld [vmem:[%s8 + $0x2] sm:$0x1]
    %v494 = vlaneseq
    %v495 = vshrl.u32 %v494, 7
    %v496 = vsub.s32 0, %v495
    %v497 = vrot.slane %v493, %v496
    %v498 = vadd.f32 %v492, %v497
    %v499 = vmax.f32 %v498, 0.0
    %v500 = vld [vmem:[%s8 + $0x3] sm:$0x1]
    %v501 = vld [vmem:[%s8 + $0x4] sm:$0x1]
    %503 = vset.pattern.permute.xlu0 0
    %504 = vperm.xlu0 %503, %v501
    %v505 = vpop.permute.xlu0 %504
    %507 = vmatprep.subr.mxu0 0.0
    %508 = vmatpush1.xpose.msra.mxu0 0.0
    %509 = vmatprep.subr.mxu0 0.0
    %510 = vmatpush1.xpose.msra.mxu0 0.0
    %511 = vmatprep.subr.mxu0 0.0
    %512 = vmatpush1.xpose.msra.mxu0 0.0
    %513 = vmatprep.subr.mxu0 0.0
    %514 = vmatpush1.xpose.msra.mxu0 0.0
    %515 = vmatprep.subr.mxu0 0.0
    %516 = vmatpush1.xpose.msra.mxu0 0.0
    %517 = vmatprep.subr.mxu0 0.0
    %518 = vmatpush1.xpose.msra.mxu0 0.0
    %519 = vmatprep.subr.mxu0 0.0
    %520 = vmatpush1.xpose.msra.mxu0 0.0
    %521 = vmatprep.subr.mxu0 0.0
    %522 = vmatpush1.xpose.msra.mxu0 0.0
    %523 = vmatprep.subr.mxu0 0.0
    %524 = vmatpush1.xpose.msra.mxu0 0.0
    %525 = vmatprep.subr.mxu0 0.0
    %526 = vmatpush1.xpose.msra.mxu0 0.0
    %527 = vmatprep.subr.mxu0 0.0
    %528 = vmatpush1.xpose.msra.mxu0 0.0
    %529 = vmatprep.subr.mxu0 0.0
    %530 = vmatpush1.xpose.msra.mxu0 0.0
    %531 = vmatprep.subr.mxu0 0.0
    %532 = vmatpush1.xpose.msra.mxu0 0.0
    %533 = vmatprep.subr.mxu0 0.0
    %534 = vmatpush1.xpose.msra.mxu0 0.0
    %535 = vmatprep.subr.mxu0 0.0
    %536 = vmatpush1.xpose.msra.mxu0 0.0
    %537 = vmatprep.subr.mxu0 0.0
    %538 = vmatpush1.xpose.msra.mxu0 %v499
    %539 = vmatprep.subr.mxu0 0.0
    %540 = vmatpush2.xpose.msra.mxu0 0.0
    %541 = vmatprep.subr.mxu0 0.0
    %542 = vmatpush2.xpose.msra.mxu0 0.0
    %543 = vmatprep.subr.mxu0 0.0
    %544 = vmatpush2.xpose.msra.mxu0 0.0
    %545 = vmatprep.subr.mxu0 0.0
    %546 = vmatpush2.xpose.msra.mxu0 0.0
    %547 = vmatprep.subr.mxu0 0.0
    %548 = vmatpush2.xpose.msra.mxu0 0.0
    %549 = vmatprep.subr.mxu0 0.0
    %550 = vmatpush2.xpose.msra.mxu0 0.0
    %551 = vmatprep.subr.mxu0 0.0
    %552 = vmatpush2.xpose.msra.mxu0 0.0
    %553 = vmatprep.subr.mxu0 0.0
    %554 = vmatpush2.xpose.msra.mxu0 0.0
    %555 = vmatprep.subr.mxu0 0.0
    %556 = vmatpush2.xpose.msra.mxu0 0.0
    %557 = vmatprep.subr.mxu0 0.0
    %558 = vmatpush2.xpose.msra.mxu0 0.0
    %559 = vmatprep.subr.mxu0 0.0
    %560 = vmatpush2.xpose.msra.mxu0 0.0
    %561 = vmatprep.subr.mxu0 0.0
    %562 = vmatpush2.xpose.msra.mxu0 0.0
    %563 = vmatprep.subr.mxu0 0.0
    %564 = vmatpush2.xpose.msra.mxu0 0.0
    %565 = vmatprep.subr.mxu0 0.0
    %566 = vmatpush2.xpose.msra.mxu0 0.0
    %567 = vmatprep.subr.mxu0 0.0
    %568 = vmatpush2.xpose.msra.mxu0 0.0
    %569 = vmatprep.subr.mxu0 0.0
    %570 = vmatpush2.xpose.msra.mxu0 0.0
    %571 = vmatprep.mubr.f32.mxu0 0.0
    %572 = vmatmul.mubr.f32.gmra.mxu0 %v500
    %v573 = vpop.f32.mrf.mxu0
    %v574 = vadd.f32 %v505, %v573
    %v575 = vpop.f32.mrf.mxu0
    %576 = vdwg.mxu0
    %vm577 = vcmask 57344
    %578 = vst.msk [vmem:[#allocation13] sm:$0x1] %vm577, %v574
    // Predicated region
    $region62: #{tpu_custom_call.1} parent=1 // pred_check
      _
    $region63: #{tpu_custom_call.1} parent=1 // pred_check_branch
      %580 = sbr.rel (0) target = $region65
    $region64: #{tpu_custom_call.1} parent=1 // pred_region
      %s582 = ssub.s32 16, 16
      %583 = vsyncadd [#allocation4], %s582
      %s585 = sshll.u32 [#allocation13], 4
      %s586 = int_to_ptr.vmem [resolvable:$true] %s585
      %588 = dma.vmem_to_hbm [thread:$0]  %s586, 16, %s9, [#allocation4]
    $region65: #{tpu_custom_call.1} parent=1 // pred_fallthru
      _
    // Predicated region
    $region66: #{tpu_custom_call.1} parent=1 // pred_check
      _
    $region67: #{tpu_custom_call.1} parent=1 // pred_check_branch
      %590 = sbr.rel (0) target = $region69
    $region68: #{tpu_custom_call.1} parent=1 // pred_region
      %591 = dma.done [#allocation4], 16
    $region69: #{tpu_custom_call.1} parent=1 // pred_fallthru
      _
    %592 = vsyncpa [#allocation3], 1
    %593 = vsyncpa [#allocation6], 1
    %594 = vsyncpa [#allocation9], 1
    %595 = vsyncpa [#allocation12], 1
    %596 = vsyncpa [#allocation4], 1

</llo_original>
